<compile_context>
chip_gen: v5e
topology: v5e:2x2
jax: 0.10.0
libtpu: 0.0.40
codegen_flags: <defaults>
</compile_context>

<pallas_src>
import jax
import jax.numpy as jnp
from jax.experimental import pallas as pl
from jax.experimental.pallas import tpu as pltpu

_LANE = 128
_MiB = 1024 * 1024


def _round_up(a, b):
    return ((a + b - 1) // b) * b


def _up2x_two_store_kernel(r_ref, x_ref, o_ref):
    # Fast path (g == 1, 2W % 128 == 0).
    # r_ref: (W, 2W)   one-hot column-doubling matrix (constant index_map).
    # x_ref: (BM, W)   block of the row-flattened input (N*C*H, W).
    # o_ref: (BM, 4W)  wide output: row q = [xr_q, xr_q].
    xr = jnp.dot(x_ref[...], r_ref[...], preferred_element_type=o_ref.dtype)
    w2 = r_ref.shape[1]
    o_ref[:, :w2] = xr          # output rows 2h   (aligned store, no concat temp)
    o_ref[:, w2:] = xr          # output rows 2h+1


def _up2x_grouped_kernel(r_ref, x_ref, o_ref):
    # Grouped path: R bakes column doubling + in-group row doubling.
    # r_ref: (g*W, 4*g*W); x_ref: (BM, g*W); o_ref: (BM, 4*g*W).
    o_ref[...] = jnp.dot(x_ref[...], r_ref[...], preferred_element_type=o_ref.dtype)


def _pick_group(W, total_rows):
    """Smallest g dividing total_rows with 4*g*W a multiple of 128 (lane dense),
    then bumped toward wider (<=512-lane) output rows while K = g*W stays modest."""
    best = None
    g = 1
    while g <= 64 and g <= total_rows:
        if total_rows % g == 0 and (4 * g * W) % _LANE == 0:
            best = g
            break
        g += 1
    if best is None:
        g = 1
        while g <= 64 and g <= total_rows:
            if total_rows % g == 0 and 4 * g * W >= _LANE:
                best = g
                break
            g += 1
    if best is None:
        best = 1
    while (4 * best * W < 512 and best * 2 <= 64
           and total_rows % (best * 2) == 0 and best * 2 * W <= 256):
        best *= 2
    return best


def upsample_nearest_2x(x, *, vmem_step_budget_bytes=6 * _MiB):
    """Nearest-neighbor 2x upsample of an NCHW tensor (== nn.Upsample(2, 'nearest'))."""
    N, C, H, W = x.shape
    total_rows = N * C * H
    dtype = x.dtype
    itemsize = jnp.dtype(dtype).itemsize
    sub_mult = max(8, 32 // itemsize)   # native sublane tile: 8 f32 / 16 bf16 / 32 int8

    # ---- choose the path / grouping factor -------------------------------
    if (2 * W) % _LANE == 0:
        g, two_store = 1, True          # cheap path: half the MXU flops
    else:
        g, two_store = _pick_group(W, total_rows), False

    gw = g * W                          # kernel-row input width
    out_w = 4 * gw                      # kernel-row output width (lane dense)
    rows = total_rows // g              # kernel rows
    x_flat = x.reshape(rows, gw)

    # ---- exact one-hot replication matrix --------------------------------
    if two_store:
        k_dim, n_dim = W, 2 * W
        row_i = jax.lax.broadcasted_iota(jnp.int32, (k_dim, n_dim), 0)
        col_i = jax.lax.broadcasted_iota(jnp.int32, (k_dim, n_dim), 1)
        r_mat = (row_i == col_i // 2).astype(dtype)
    else:
        k_dim, n_dim = gw, out_w
        row_i = jax.lax.broadcasted_iota(jnp.int32, (k_dim, n_dim), 0)
        col_i = jax.lax.broadcasted_iota(jnp.int32, (k_dim, n_dim), 1)
        # output column c sources input index (c // 4W)*W + (c % 2W)//2
        src = (col_i // (4 * W)) * W + (col_i % (2 * W)) // 2
        r_mat = (row_i == src).astype(dtype)

    # ---- VMEM accounting: padded tiles, x2 buffering, R, intermediate ----
    in_w_pad = _round_up(gw, _LANE)
    out_w_pad = _round_up(out_w, _LANE)
    r_bytes = 2 * _round_up(k_dim, sub_mult) * _round_up(n_dim, _LANE) * itemsize
    per_row = (itemsize * (2 * in_w_pad + 2 * out_w_pad)        # x + out, double-buffered
               + 4 * _round_up(n_dim, _LANE))                   # matmul intermediate (worst case f32)
    avail = max(vmem_step_budget_bytes - r_bytes, per_row * sub_mult)
    rows_budget = max(sub_mult, avail // per_row)

    bm = min(rows, int(rows_budget))
    if rows > sub_mult:
        # keep >= 2 grid steps so the parallel axis can shard across v7x's two
        # TensorCores (and balances the pipeline on single-TC chips).
        bm = min(bm, _round_up(pl.cdiv(rows, 2), sub_mult))
    bm = max(sub_mult, (bm // sub_mult) * sub_mult)
    if bm >= rows:
        bm = rows                       # full-dim block is always legal
    grid = (pl.cdiv(rows, bm),)

    vmem_needed = r_bytes + bm * per_row + 2 * _MiB
    vmem_limit = int(min(48 * _MiB, max(32 * _MiB, vmem_needed)))

    cost = pl.CostEstimate(
        flops=int(2 * rows * k_dim * n_dim),
        transcendentals=0,
        bytes_accessed=int((5 * x.size + r_mat.size) * itemsize),
    )

    kernel = _up2x_two_store_kernel if two_store else _up2x_grouped_kernel

    out_wide = pl.pallas_call(
        kernel,
        out_shape=jax.ShapeDtypeStruct((rows, out_w), dtype),
        grid=grid,
        in_specs=[
            pl.BlockSpec((k_dim, n_dim), lambda i: (0, 0)),   # R: constant, VMEM-resident
            pl.BlockSpec((bm, gw), lambda i: (i, 0)),         # input row block
        ],
        out_specs=pl.BlockSpec((bm, out_w), lambda i: (i, 0)),
        compiler_params=pltpu.CompilerParams(
            dimension_semantics=("parallel",),
            vmem_limit_bytes=vmem_limit,
        ),
        cost_estimate=cost,
    )(r_mat, x_flat)

    # Free row-major reshape: the wide rows are exactly the nearest-neighbor
    # upsampled tensor laid out contiguously.
    return out_wide.reshape(N, C, 2 * H, 2 * W)


class UpIn2DAdain:
    """JAX/Pallas port of Up_In2D_adain. forward(x) = nearest 2x upsample.

    The PyTorch module holds no parameters; n_ch is accepted only for
    constructor parity.
    """

    def __init__(self, n_ch):
        self.n_ch = n_ch  # unused, mirrors the PyTorch __init__

    def __call__(self, x):
        return upsample_nearest_2x(x)


if __name__ == "__main__":
    key = jax.random.PRNGKey(0)
    N, C, H, W = 2, 4, 16, 16
    x = jax.random.normal(key, (N, C, H, W), dtype=jnp.float32)

    mod = UpIn2DAdain(n_ch=C)
    y = jax.block_until_ready(mod(x))

    assert y.shape == (N, C, 2 * H, 2 * W), y.shape

    # Reference: nearest-neighbor upsample via repeat (matches PyTorch semantics).
    ref = jnp.repeat(jnp.repeat(x, 2, axis=2), 2, axis=3)
    max_err = float(jnp.max(jnp.abs(y - ref)))
    assert jnp.allclose(y, ref, atol=0.0, rtol=0.0), max_err

    print("KERNEL_OK")
</pallas_src>

<mosaic_0001>
module attributes {stable_mosaic.version = 11 : i64} {
  func.func @_up2x_grouped_kernel(%arg0: i32, %arg1: memref<128x512xf32, #tpu.memory_space<vmem>>, %arg2: memref<8x128xf32, #tpu.memory_space<vmem>>, %arg3: memref<8x512xf32, #tpu.memory_space<vmem>>) attributes {dimension_semantics = [#tpu.dimension_semantics<parallel>], iteration_bounds = array<i64: 2>, scalar_prefetch = 0 : i64, scratch_operands = 0 : i64, tpu.core_type = #tpu.core_type<tc>, window_params = [{pipeline_mode = #tpu.pipeline_mode<synchronous>, transform_indices = @transform_0, window_bounds = array<i64: 128, 512>}, {transform_indices = @transform_1, window_bounds = array<i64: 8, 128>}, {transform_indices = @transform_2, window_bounds = array<i64: 8, 512>}]} {
    %c0 = arith.constant 0 : index
    %c0_0 = arith.constant 0 : index
    %0 = vector.load %arg2[%c0, %c0_0] : memref<8x128xf32, #tpu.memory_space<vmem>>, vector<8x128xf32>
    %c0_1 = arith.constant 0 : index
    %c0_2 = arith.constant 0 : index
    %1 = vector.load %arg1[%c0_1, %c0_2] : memref<128x512xf32, #tpu.memory_space<vmem>>, vector<128x512xf32>
    %cst = arith.constant dense<0.000000e+00> : vector<8x512xf32>
    %2 = tpu.matmul %0, %1, %cst {dimension_numbers = #tpu.dot_dimension_numbers<[1], [0], [0], [1], [0, 0, 1, 1], [], []>} : vector<8x128xf32>, vector<128x512xf32>, vector<8x512xf32> -> vector<8x512xf32>
    %c0_3 = arith.constant 0 : index
    %c0_4 = arith.constant 0 : index
    %3 = vector.load %arg3[%c0_3, %c0_4] : memref<8x512xf32, #tpu.memory_space<vmem>>, vector<8x512xf32>
    tpu.vector_store %arg3[%c0_3, %c0_4], %2 {strides = array<i32>} : memref<8x512xf32, #tpu.memory_space<vmem>>, vector<8x512xf32>,
    return
  }
  func.func @transform_0(%arg0: i32) -> (i32, i32) {
    %c0_i32 = arith.constant 0 : i32
    %c0_i32_0 = arith.constant 0 : i32
    %c0_i32_1 = arith.constant 0 : i32
    return %c0_i32, %c0_i32_0 : i32, i32
  }
  func.func @transform_1(%arg0: i32) -> (i32, i32) {
    %c0_i32 = arith.constant 0 : i32
    %c0_i32_0 = arith.constant 0 : i32
    return %arg0, %c0_i32 : i32, i32
  }
  func.func @transform_2(%arg0: i32) -> (i32, i32) {
    %c0_i32 = arith.constant 0 : i32
    %c0_i32_0 = arith.constant 0 : i32
    return %arg0, %c0_i32 : i32, i32
  }
}

</mosaic_0001>

<llo_original>
// kernel: tpu_custom_call.1
$region0: #{tpu_custom_call.1}
  #allocation0 [shape = 'u32[]', space=smem, size = 0x4, offset = 0x4, fixed_abs, tag = 'smem constant byte address 0x4 - core index']
  #allocation1 [shape = 'u32[72,128]{1,0:T(1,128)}', space=vmem, size = 0x9000, scoped, tag = 'internal scratch']
  %s0 = inlined_call_operand.hbm [shape: f32[128,512], index: 0, kind: input, shape index: {}]
  %s1 = inlined_call_operand.hbm [shape: f32[16,128], index: 1, kind: input, shape index: {}]
  %s2 = inlined_call_operand.hbm [shape: f32[16,512], index: 2, kind: output, shape index: {}]
  %s3 = sld [smem:[#allocation0]]
  $region49: #{tpu_custom_call.1} parent=0
    _
  %s5 = ssub.s32 1, %s3
  %s6 = scalar_select 0, %s5, %s3
  $region1: #{tpu_custom_call.1} parent=0
    #allocation2 [shape = 'u8[262144]{0}', space=vmem, size = 0x40000, scoped, tag = 'input window, operand 0, single buffered']
    #allocation3 [shape = 's32[2]{0}', space=sflag, size = 0x8, scoped, tag = 'scoped memory for tpu_custom_call.1']
    #allocation4 [shape = 's32[2]{0}', space=sflag, size = 0x8, scoped, tag = 'scoped memory for tpu_custom_call.1']
    #allocation5 [shape = 'u8[8192]{0}', space=vmem, size = 0x2000, scoped, tag = 'input window, operand 1']
    #allocation6 [shape = 's32[2]{0}', space=sflag, size = 0x8, scoped, tag = 'scoped memory for tpu_custom_call.1']
    #allocation7 [shape = 'u8[32768]{0}', space=vmem, size = 0x8000, scoped, tag = 'output window, operand 0']
    %7 = vsyncpa [#allocation3], 0
    %8 = vsyncpa [#allocation6], 0
    %s9 = scalar_lea.sflag [#allocation6], 1
    %10 = vsyncpa %s9, 0
    %11 = vsyncpa [#allocation4], 0
    %s12 = scalar_lea.sflag [#allocation4], 1
    %13 = vsyncpa %s12, 0
    loop: start=0, step=1, limit=4
    $region2: #{tpu_custom_call.1} parent=1 // loop_pre_header
      _
    $region3: #{tpu_custom_call.1} parent=1 // loop_header
      %s15 = sphi 0, %s19
      %p16 = scmp.ge.s32.totalorder %s15, 4
      %s23 = sphi 0, %s23
      %s25 = sphi 0, %s23
      %s26 = sphi 0, %s25
      %s40 = sphi 0, %s26
      %s46 = sphi 0, %s48
      %s49 = sphi 0, %s46
      %s50 = sphi 0, %s49
      %s66 = sphi 0, %s50
      %s72 = sphi 0, %s74
      %s75 = sphi 0, %s72
      %s76 = sphi 0, %s75
      %s92 = sphi 0, %s76
    $region4: #{tpu_custom_call.1} parent=1 // loop_header_branch
      %18 = sbr.rel (%p16) target = $region8
    $region5: #{tpu_custom_call.1} parent=1 // loop_body
      %s20 = ssub.s32 %s15, 1
      %s21 = ssub.s32 %s15, 2
      %s22 = sadd.s32 %s15, 1
      %s24 = sadd.s32 %s23, 1
      %p27 = scmp.eq.s32.totalorder %s15, 1
      %p28 = scmp.ne.s32.totalorder %s23, %s25
      %p29 = scmp.eq.s32.totalorder %s15, 0
      %p30 = por %p28, %p29
      %p31 = scmp.ne.s32.totalorder %s23, %s25
      %p32 = scmp.eq.s32.totalorder %s20, 1
      %p33 = por %p31, %p32
      %p34 = scmp.ne.s32.totalorder %s25, %s26
      %p35 = scmp.eq.s32.totalorder %s20, 0
      %p36 = por %p34, %p35
      %p37 = scmp.ne.s32.totalorder %s25, %s26
      %p38 = scmp.eq.s32.totalorder %s21, 1
      %p39 = por %p37, %p38
      %p41 = scmp.ne.s32.totalorder %s26, %s40
      %p42 = scmp.eq.s32.totalorder %s21, 0
      %p43 = por %p41, %p42
      %s44 = ssub.s32 %s15, %s22
      %p45 = scmp.eq.s32.totalorder %s44, 0
      %s47 = sadd.s32 %s46, 1
      %s48 = scalar_select %p45, %s46, %s47
      %p51 = pneg %p45
      %p52 = scmp.eq.s32.totalorder %s15, 1
      %p53 = por %p51, %p52
      %p54 = scmp.ne.s32.totalorder %s46, %s49
      %p55 = scmp.eq.s32.totalorder %s15, 0
      %p56 = por %p54, %p55
      %p57 = scmp.ne.s32.totalorder %s46, %s49
      %p58 = scmp.eq.s32.totalorder %s20, 1
      %p59 = por %p57, %p58
      %p60 = scmp.ne.s32.totalorder %s49, %s50
      %p61 = scmp.eq.s32.totalorder %s20, 0
      %p62 = por %p60, %p61
      %p63 = scmp.ne.s32.totalorder %s49, %s50
      %p64 = scmp.eq.s32.totalorder %s21, 1
      %p65 = por %p63, %p64
      %p67 = scmp.ne.s32.totalorder %s50, %s66
      %p68 = scmp.eq.s32.totalorder %s21, 0
      %p69 = por %p67, %p68
      %s70 = ssub.s32 %s15, %s22
      %p71 = scmp.eq.s32.totalorder %s70, 0
      %s73 = sadd.s32 %s72, 1
      %s74 = scalar_select %p71, %s72, %s73
      %p77 = pneg %p71
      %p78 = scmp.eq.s32.totalorder %s15, 1
      %p79 = por %p77, %p78
      %p80 = scmp.ne.s32.totalorder %s72, %s75
      %p81 = scmp.eq.s32.totalorder %s15, 0
      %p82 = por %p80, %p81
      %p83 = scmp.ne.s32.totalorder %s72, %s75
      %p84 = scmp.eq.s32.totalorder %s20, 1
      %p85 = por %p83, %p84
      %p86 = scmp.ne.s32.totalorder %s75, %s76
      %p87 = scmp.eq.s32.totalorder %s20, 0
      %p88 = por %p86, %p87
      %p89 = scmp.ne.s32.totalorder %s75, %s76
      %p90 = scmp.eq.s32.totalorder %s21, 1
      %p91 = por %p89, %p90
      %p93 = scmp.ne.s32.totalorder %s76, %s92
      %p94 = scmp.eq.s32.totalorder %s21, 0
      %p95 = por %p93, %p94
      %p96 = scmp.le.s32.totalorder 1, %s15
      %p97 = scmp.lt.s32.totalorder %s15, 3
      %p98 = pnand %p96, %p97
      %p99 = pneg %p98
      // Predicated region
      $region9: #{tpu_custom_call.1} parent=5 // pred_check
        _
      $region10: #{tpu_custom_call.1} parent=5 // pred_check_branch
        %101 = sbr.rel (%p98) target = $region12
      $region11: #{tpu_custom_call.1} parent=5 // pred_region
        %s102 = ssub.s32 %s15, 1
        // Predicated region
        $region13: #{tpu_custom_call.1} parent=11 // pred_check
          %p103 = pneg %p36
        $region14: #{tpu_custom_call.1} parent=11 // pred_check_branch
          %105 = sbr.rel (%p103) target = $region16
        $region15: #{tpu_custom_call.1} parent=11 // pred_region
          %107 = vsyncadd [#allocation3], 0
          %s108 = sshll.u32 %s0, 4
          %s109 = int_to_ptr.hbm [resolvable:$true] %s108
          %s110 = sshll.u32 [#allocation2], 4
          %s111 = int_to_ptr.vmem [resolvable:$true] %s110
          %116 = dma.hbm_to_vmem [thread:$0]  %s109, 8192, %s111, [#allocation3], 512, 512, 32
        $region16: #{tpu_custom_call.1} parent=11 // pred_fallthru
          _
      $region12: #{tpu_custom_call.1} parent=5 // pred_fallthru
        _
      %p117 = scmp.lt.s32.totalorder %s15, 2
      // Predicated region
      $region17: #{tpu_custom_call.1} parent=5 // pred_check
        %p118 = pneg %p117
      $region18: #{tpu_custom_call.1} parent=5 // pred_check_branch
        %120 = sbr.rel (%p118) target = $region20
      $region19: #{tpu_custom_call.1} parent=5 // pred_region
        // Predicated region
        $region21: #{tpu_custom_call.1} parent=19 // pred_check
          %p121 = pneg %p56
        $region22: #{tpu_custom_call.1} parent=19 // pred_check_branch
          %123 = sbr.rel (%p121) target = $region24
        $region23: #{tpu_custom_call.1} parent=19 // pred_region
          %s124 = sand.u32 %s46, 1
          %s125 = scalar_lea.sflag [#allocation6], %s124
          %s126 = sand.u32 %s46, 1
          %s127 = smul.addr %s126, 8
          %s128 = scalar_lea.vmem [#allocation5], %s127
          %130 = vsyncadd %s125, 0
          %s131 = smul.addr %s15, 8
          %s132 = scalar_lea.hbm %s1, %s131
          %s134 = sshll.u32 %s132, 4
          %s135 = int_to_ptr.hbm [resolvable:$true] %s134
          %s136 = sshll.u32 %s128, 4
          %s137 = int_to_ptr.vmem [resolvable:$true] %s136
          %139 = dma.hbm_to_vmem [thread:$0]  %s135, 128, %s137, %s125
        $region24: #{tpu_custom_call.1} parent=19 // pred_fallthru
          _
      $region20: #{tpu_custom_call.1} parent=5 // pred_fallthru
        _
      %p140 = scmp.le.s32.totalorder 1, %s15
      %p141 = scmp.lt.s32.totalorder %s15, 3
      %p142 = pnand %p140, %p141
      %p143 = pneg %p142
      // Predicated region
      $region25: #{tpu_custom_call.1} parent=5 // pred_check
        _
      $region26: #{tpu_custom_call.1} parent=5 // pred_check_branch
        %145 = sbr.rel (%p142) target = $region28
      $region27: #{tpu_custom_call.1} parent=5 // pred_region
        %s146 = ssub.s32 %s15, 1
        // Predicated region
        $region29: #{tpu_custom_call.1} parent=27 // pred_check
          %p147 = pneg %p36
        $region30: #{tpu_custom_call.1} parent=27 // pred_check_branch
          %149 = sbr.rel (%p147) target = $region32
        $region31: #{tpu_custom_call.1} parent=27 // pred_region
          %151 = dma.done [#allocation3], 8192
        $region32: #{tpu_custom_call.1} parent=27 // pred_fallthru
          _
        %s152 = sand.u32 %s49, 1
        %s153 = scalar_lea.sflag [#allocation6], %s152
        %s154 = sand.u32 %s49, 1
        %s155 = smul.addr %s154, 8
        %s156 = scalar_lea.vmem [#allocation5], %s155
        // Predicated region
        $region33: #{tpu_custom_call.1} parent=27 // pred_check
          %p157 = pneg %p62
        $region34: #{tpu_custom_call.1} parent=27 // pred_check_branch
          %159 = sbr.rel (%p157) target = $region36
        $region35: #{tpu_custom_call.1} parent=27 // pred_region
          %161 = dma.done %s153, 128
        $region36: #{tpu_custom_call.1} parent=27 // pred_fallthru
          _
        %p162 = pneg %p36
        %p163 = pneg %p33
        %s164 = sand.u32 %s49, 1
        %s165 = scalar_lea.sflag [#allocation6], %s164
        %s166 = sand.u32 %s49, 1
        %s167 = smul.addr %s166, 8
        %s168 = scalar_lea.vmem [#allocation5], %s167
        %p169 = pneg %p62
        %p170 = pneg %p59
        %p171 = pneg %p88
        %p172 = pneg %p85
        %s173 = sand.u32 %s75, 1
        %s174 = scalar_lea.sflag [#allocation4], %s173
        %s175 = sand.u32 %s75, 1
        %s176 = smul.addr %s175, 32
        %s177 = scalar_lea.vmem [#allocation7], %s176
        %v178 = vld [vmem:[%s156] sm:$0xff]
        %v179 = vld [vmem:[#allocation2] sm:$0xff]
        %v180 = vld [vmem:[#allocation2 + $0x8] sm:$0xff]
        %v181 = vld [vmem:[#allocation2 + $0x10] sm:$0xff]
        %v182 = vld [vmem:[#allocation2 + $0x18] sm:$0xff]
        %v183 = vld [vmem:[#allocation2 + $0x20] sm:$0xff]
        %v184 = vld [vmem:[#allocation2 + $0x28] sm:$0xff]
        %v185 = vld [vmem:[#allocation2 + $0x30] sm:$0xff]
        %v186 = vld [vmem:[#allocation2 + $0x38] sm:$0xff]
        %v187 = vld [vmem:[#allocation2 + $0x40] sm:$0xff]
        %v188 = vld [vmem:[#allocation2 + $0x48] sm:$0xff]
        %v189 = vld [vmem:[#allocation2 + $0x50] sm:$0xff]
        %v190 = vld [vmem:[#allocation2 + $0x58] sm:$0xff]
        %v191 = vld [vmem:[#allocation2 + $0x60] sm:$0xff]
        %v192 = vld [vmem:[#allocation2 + $0x68] sm:$0xff]
        %v193 = vld [vmem:[#allocation2 + $0x70] sm:$0xff]
        %v194 = vld [vmem:[#allocation2 + $0x78] sm:$0xff]
        %v195 = vld [vmem:[#allocation2 + $0x80] sm:$0xff]
        %v196 = vld [vmem:[#allocation2 + $0x88] sm:$0xff]
        %v197 = vld [vmem:[#allocation2 + $0x90] sm:$0xff]
        %v198 = vld [vmem:[#allocation2 + $0x98] sm:$0xff]
        %v199 = vld [vmem:[#allocation2 + $0xa0] sm:$0xff]
        %v200 = vld [vmem:[#allocation2 + $0xa8] sm:$0xff]
        %v201 = vld [vmem:[#allocation2 + $0xb0] sm:$0xff]
        %v202 = vld [vmem:[#allocation2 + $0xb8] sm:$0xff]
        %v203 = vld [vmem:[#allocation2 + $0xc0] sm:$0xff]
        %v204 = vld [vmem:[#allocation2 + $0xc8] sm:$0xff]
        %v205 = vld [vmem:[#allocation2 + $0xd0] sm:$0xff]
        %v206 = vld [vmem:[#allocation2 + $0xd8] sm:$0xff]
        %v207 = vld [vmem:[#allocation2 + $0xe0] sm:$0xff]
        %v208 = vld [vmem:[#allocation2 + $0xe8] sm:$0xff]
        %v209 = vld [vmem:[#allocation2 + $0xf0] sm:$0xff]
        %v210 = vld [vmem:[#allocation2 + $0xf8] sm:$0xff]
        %v211 = vld [vmem:[#allocation2 + $0x100] sm:$0xff]
        %v212 = vld [vmem:[#allocation2 + $0x108] sm:$0xff]
        %v213 = vld [vmem:[#allocation2 + $0x110] sm:$0xff]
        %v214 = vld [vmem:[#allocation2 + $0x118] sm:$0xff]
        %v215 = vld [vmem:[#allocation2 + $0x120] sm:$0xff]
        %v216 = vld [vmem:[#allocation2 + $0x128] sm:$0xff]
        %v217 = vld [vmem:[#allocation2 + $0x130] sm:$0xff]
        %v218 = vld [vmem:[#allocation2 + $0x138] sm:$0xff]
        %v219 = vld [vmem:[#allocation2 + $0x140] sm:$0xff]
        %v220 = vld [vmem:[#allocation2 + $0x148] sm:$0xff]
        %v221 = vld [vmem:[#allocation2 + $0x150] sm:$0xff]
        %v222 = vld [vmem:[#allocation2 + $0x158] sm:$0xff]
        %v223 = vld [vmem:[#allocation2 + $0x160] sm:$0xff]
        %v224 = vld [vmem:[#allocation2 + $0x168] sm:$0xff]
        %v225 = vld [vmem:[#allocation2 + $0x170] sm:$0xff]
        %v226 = vld [vmem:[#allocation2 + $0x178] sm:$0xff]
        %v227 = vld [vmem:[#allocation2 + $0x180] sm:$0xff]
        %v228 = vld [vmem:[#allocation2 + $0x188] sm:$0xff]
        %v229 = vld [vmem:[#allocation2 + $0x190] sm:$0xff]
        %v230 = vld [vmem:[#allocation2 + $0x198] sm:$0xff]
        %v231 = vld [vmem:[#allocation2 + $0x1a0] sm:$0xff]
        %v232 = vld [vmem:[#allocation2 + $0x1a8] sm:$0xff]
        %v233 = vld [vmem:[#allocation2 + $0x1b0] sm:$0xff]
        %v234 = vld [vmem:[#allocation2 + $0x1b8] sm:$0xff]
        %v235 = vld [vmem:[#allocation2 + $0x1c0] sm:$0xff]
        %v236 = vld [vmem:[#allocation2 + $0x1c8] sm:$0xff]
        %v237 = vld [vmem:[#allocation2 + $0x1d0] sm:$0xff]
        %v238 = vld [vmem:[#allocation2 + $0x1d8] sm:$0xff]
        %v239 = vld [vmem:[#allocation2 + $0x1e0] sm:$0xff]
        %v240 = vld [vmem:[#allocation2 + $0x1e8] sm:$0xff]
        %v241 = vld [vmem:[#allocation2 + $0x1f0] sm:$0xff]
        %v242 = vld [vmem:[#allocation2 + $0x1f8] sm:$0xff]
        %243 = vmatpush.msra.mxu0 %v239
        %244 = vmatpush.msra.mxu0 %v235
        %245 = vmatpush.msra.mxu0 %v231
        %246 = vmatpush.msra.mxu0 %v227
        %247 = vmatpush.msra.mxu0 %v223
        %248 = vmatpush.msra.mxu0 %v219
        %249 = vmatpush.msra.mxu0 %v215
        %250 = vmatpush.msra.mxu0 %v211
        %251 = vmatpush.msra.mxu0 %v207
        %252 = vmatpush.msra.mxu0 %v203
        %253 = vmatpush.msra.mxu0 %v199
        %254 = vmatpush.msra.mxu0 %v195
        %255 = vmatpush.msra.mxu0 %v191
        %256 = vmatpush.msra.mxu0 %v187
        %257 = vmatpush.msra.mxu0 %v183
        %258 = vmatpush.msra.mxu0 %v179
        %259 = vmatmul.f32.gmra.mxu0 %v178
        %v260 = vpop.f32.mrf.mxu0
        %v261 = vadd.f32 0.0, %v260
        %262 = vdwg.mxu0
        %263 = vmatpush.msra.mxu0 %v240
        %264 = vmatpush.msra.mxu0 %v236
        %265 = vmatpush.msra.mxu0 %v232
        %266 = vmatpush.msra.mxu0 %v228
        %267 = vmatpush.msra.mxu0 %v224
        %268 = vmatpush.msra.mxu0 %v220
        %269 = vmatpush.msra.mxu0 %v216
        %270 = vmatpush.msra.mxu0 %v212
        %271 = vmatpush.msra.mxu0 %v208
        %272 = vmatpush.msra.mxu0 %v204
        %273 = vmatpush.msra.mxu0 %v200
        %274 = vmatpush.msra.mxu0 %v196
        %275 = vmatpush.msra.mxu0 %v192
        %276 = vmatpush.msra.mxu0 %v188
        %277 = vmatpush.msra.mxu0 %v184
        %278 = vmatpush.msra.mxu0 %v180
        %279 = vmatmul.f32.gmra.mxu0 %v178
        %v280 = vpop.f32.mrf.mxu0
        %v281 = vadd.f32 0.0, %v280
        %282 = vdwg.mxu0
        %283 = vmatpush.msra.mxu0 %v241
        %284 = vmatpush.msra.mxu0 %v237
        %285 = vmatpush.msra.mxu0 %v233
        %286 = vmatpush.msra.mxu0 %v229
        %287 = vmatpush.msra.mxu0 %v225
        %288 = vmatpush.msra.mxu0 %v221
        %289 = vmatpush.msra.mxu0 %v217
        %290 = vmatpush.msra.mxu0 %v213
        %291 = vmatpush.msra.mxu0 %v209
        %292 = vmatpush.msra.mxu0 %v205
        %293 = vmatpush.msra.mxu0 %v201
        %294 = vmatpush.msra.mxu0 %v197
        %295 = vmatpush.msra.mxu0 %v193
        %296 = vmatpush.msra.mxu0 %v189
        %297 = vmatpush.msra.mxu0 %v185
        %298 = vmatpush.msra.mxu0 %v181
        %299 = vmatmul.f32.gmra.mxu0 %v178
        %v300 = vpop.f32.mrf.mxu0
        %v301 = vadd.f32 0.0, %v300
        %302 = vdwg.mxu0
        %303 = vmatpush.msra.mxu0 %v242
        %304 = vmatpush.msra.mxu0 %v238
        %305 = vmatpush.msra.mxu0 %v234
        %306 = vmatpush.msra.mxu0 %v230
        %307 = vmatpush.msra.mxu0 %v226
        %308 = vmatpush.msra.mxu0 %v222
        %309 = vmatpush.msra.mxu0 %v218
        %310 = vmatpush.msra.mxu0 %v214
        %311 = vmatpush.msra.mxu0 %v210
        %312 = vmatpush.msra.mxu0 %v206
        %313 = vmatpush.msra.mxu0 %v202
        %314 = vmatpush.msra.mxu0 %v198
        %315 = vmatpush.msra.mxu0 %v194
        %316 = vmatpush.msra.mxu0 %v190
        %317 = vmatpush.msra.mxu0 %v186
        %318 = vmatpush.msra.mxu0 %v182
        %319 = vmatmul.f32.gmra.mxu0 %v178
        %v320 = vpop.f32.mrf.mxu0
        %v321 = vadd.f32 0.0, %v320
        %322 = vdwg.mxu0
        %323 = vst [vmem:[%s177] sm:$0xff] %v261
        %324 = vst [vmem:[%s177 + $0x8] sm:$0xff] %v281
        %325 = vst [vmem:[%s177 + $0x10] sm:$0xff] %v301
        %326 = vst [vmem:[%s177 + $0x18] sm:$0xff] %v321
        %s327 = sand.u32 %s75, 1
        %s328 = scalar_lea.sflag [#allocation4], %s327
        %s329 = sand.u32 %s75, 1
        %s330 = smul.addr %s329, 32
        %s331 = scalar_lea.vmem [#allocation7], %s330
        // Predicated region
        $region37: #{tpu_custom_call.1} parent=27 // pred_check
          %p332 = pneg %p85
        $region38: #{tpu_custom_call.1} parent=27 // pred_check_branch
          %334 = sbr.rel (%p332) target = $region40
        $region39: #{tpu_custom_call.1} parent=27 // pred_region
          %336 = vsyncadd %s328, 0
          %s337 = smul.addr %s20, 4
          %s338 = smul.addr %s337, 8
          %s339 = scalar_lea.hbm %s2, %s338
          %s341 = sshll.u32 %s331, 4
          %s342 = int_to_ptr.vmem [resolvable:$true] %s341
          %s343 = sshll.u32 %s339, 4
          %s344 = int_to_ptr.hbm [resolvable:$true] %s343
          %346 = dma.vmem_to_hbm [thread:$0]  %s342, 512, %s344, %s328
        $region40: #{tpu_custom_call.1} parent=27 // pred_fallthru
          _
      $region28: #{tpu_custom_call.1} parent=5 // pred_fallthru
        _
      %p347 = scmp.le.s32.totalorder 2, %s15
      // Predicated region
      $region41: #{tpu_custom_call.1} parent=5 // pred_check
        %p348 = pneg %p347
      $region42: #{tpu_custom_call.1} parent=5 // pred_check_branch
        %350 = sbr.rel (%p348) target = $region44
      $region43: #{tpu_custom_call.1} parent=5 // pred_region
        %s351 = ssub.s32 %s15, 2
        // Predicated region
        $region45: #{tpu_custom_call.1} parent=43 // pred_check
          %p352 = pneg %p91
        $region46: #{tpu_custom_call.1} parent=43 // pred_check_branch
          %354 = sbr.rel (%p352) target = $region48
        $region47: #{tpu_custom_call.1} parent=43 // pred_region
          %s355 = sand.u32 %s76, 1
          %s356 = scalar_lea.sflag [#allocation4], %s355
          %s357 = sand.u32 %s76, 1
          %s358 = smul.addr %s357, 32
          %s359 = scalar_lea.vmem [#allocation7], %s358
          %361 = dma.done %s356, 512
        $region48: #{tpu_custom_call.1} parent=43 // pred_fallthru
          _
      $region44: #{tpu_custom_call.1} parent=5 // pred_fallthru
        _
    $region6: #{tpu_custom_call.1} parent=1 // loop_footer
      %s19 = sadd.s32 1, %s15
    $region7: #{tpu_custom_call.1} parent=1 // loop_footer_branch
      %14 = sbr.rel target = $region3
    $region8: #{tpu_custom_call.1} parent=1 // loop_exit
      _
    %362 = vsyncpa [#allocation3], 1
    %s363 = scalar_lea.sflag [#allocation3], 1
    %364 = vsyncpa %s363, 1
    %365 = vsyncpa [#allocation6], 1
    %s366 = scalar_lea.sflag [#allocation6], 1
    %367 = vsyncpa %s366, 1
    %368 = vsyncpa [#allocation4], 1
    %s369 = scalar_lea.sflag [#allocation4], 1
    %370 = vsyncpa %s369, 1

</llo_original>
